<compile_context>
chip_gen: v7x
topology: tpu7x:2x2x1
jax: 0.10.0
libtpu: 0.0.40
codegen_flags: <defaults>
</compile_context>

<pallas_src>
import functools

import jax
import jax.numpy as jnp
from jax.experimental import pallas as pl
from jax.experimental.pallas import tpu as pltpu


def _round_up(x, m):
    return (x + m - 1) // m * m


def vnetwork_kernel(x_ref, w1_ref, b1_ref, w2_ref, b2_ref, w3_ref, b3_ref, o_ref):
    # Streamed f32 state tile -> bf16 for the MXU (f32 accumulation).
    x = x_ref[...].astype(jnp.bfloat16)
    # Layer 1: MXU matmul, bias + ReLU in f32 on the accumulator.
    h1 = jnp.dot(x, w1_ref[...], preferred_element_type=jnp.float32)
    h1 = jnp.maximum(h1 + b1_ref[...], 0.0)
    # Layer 2: cast activations back to bf16 for the MXU, accumulate in f32.
    h2 = jnp.dot(h1.astype(jnp.bfloat16), w2_ref[...],
                 preferred_element_type=jnp.float32)
    h2 = jnp.maximum(h2 + b2_ref[...], 0.0)
    # Layer 3 (out_features = 1): VPU multiply + cross-lane (XLU) reduction.
    # w3 is an f32 (1, hidden) row; broadcast-multiply then reduce over lanes.
    o_ref[...] = jnp.sum(h2 * w3_ref[...], axis=-1, keepdims=True) + b3_ref[...]


def _vmem_footprint_bytes(tile_b, num_inputs, hidden_dim):
    # Double-buffered streaming tiles: f32 state in, f32 (tile_b, 1) out.
    stream = 2 * (tile_b * num_inputs * 4 + tile_b * 4)
    # Resident weights (budget x2 for buffering): bf16 w1/w2, f32 biases + w3.
    weights = 2 * ((num_inputs * hidden_dim + hidden_dim * hidden_dim) * 2
                   + (3 * hidden_dim + 1) * 4)
    # Live in-kernel values (x_bf16, h1, h2, product), counted as f32.
    acts = 4 * tile_b * hidden_dim * 4
    return stream + weights + acts


def _pick_tile_b(batch, num_inputs, hidden_dim, max_tile_b, vmem_budget_bytes):
    # Whole batch in one tile when it fits: block == full array dim, so no
    # sublane-alignment requirement and no partial blocks at all.
    if batch <= max_tile_b and \
            _vmem_footprint_bytes(batch, num_inputs, hidden_dim) <= vmem_budget_bytes:
        return batch
    # Otherwise tile the batch; tiles smaller than the batch must be multiples
    # of 8 (f32 sublane); the last (partial) tile is handled by Pallas.
    tile_b = min(_round_up(max_tile_b, 8), _round_up(batch, 8))
    while tile_b > 8 and \
            _vmem_footprint_bytes(tile_b, num_inputs, hidden_dim) > vmem_budget_bytes:
        tile_b = max(8, _round_up(tile_b // 2, 8))
    return tile_b


@functools.partial(jax.jit, static_argnames=("max_tile_b", "vmem_budget_bytes"))
def vnetwork_forward(state, params, *, max_tile_b=1024, vmem_budget_bytes=24 << 20):
    """Pallas forward pass of VNetwork. state: (B, num_inputs)."""
    w1, b1, w2, b2, w3, b3 = params
    state = state.astype(jnp.float32)          # no-op for f32 inputs
    B, num_inputs = state.shape
    hidden_dim = w1.shape[1]

    tile_b = _pick_tile_b(B, num_inputs, hidden_dim, max_tile_b, vmem_budget_bytes)
    num_tiles = pl.cdiv(B, tile_b)

    # Weights/biases: constant index_map -> stay resident in VMEM across the
    # whole batch sweep (no per-tile re-DMA).
    resident = lambda shape: pl.BlockSpec(shape, lambda i: (0, 0))

    vmem_limit = int(min(max(2 * _vmem_footprint_bytes(tile_b, num_inputs, hidden_dim),
                             16 << 20), 48 << 20))  # stays under v7x 64 MiB physical

    out = pl.pallas_call(
        vnetwork_kernel,
        out_shape=jax.ShapeDtypeStruct((B, 1), jnp.float32),
        grid=(num_tiles,),
        in_specs=[
            pl.BlockSpec((tile_b, num_inputs), lambda i: (i, 0)),
            resident(w1.shape), resident(b1.shape),
            resident(w2.shape), resident(b2.shape),
            resident(w3.shape), resident(b3.shape),
        ],
        out_specs=pl.BlockSpec((tile_b, 1), lambda i: (i, 0)),
        compiler_params=pltpu.CompilerParams(
            dimension_semantics=("parallel",),   # batch tiles are independent
            vmem_limit_bytes=vmem_limit,
        ),
    )(state, w1, b1, w2, b2, w3, b3)

    return out


def xavier_uniform(key, fan_in, fan_out, gain=1.0):
    # Matches torch.nn.init.xavier_uniform_ distribution (stored (in, out)).
    limit = gain * jnp.sqrt(6.0 / (fan_in + fan_out))
    return jax.random.uniform(key, (fan_in, fan_out), jnp.float32, -limit, limit)


def init_vnetwork_params(key, num_inputs, hidden_dim):
    k1, k2, k3 = jax.random.split(key, 3)
    # MXU-facing weights in bf16 (f32 accumulation in the kernel).
    w1 = xavier_uniform(k1, num_inputs, hidden_dim).astype(jnp.bfloat16)
    b1 = jnp.zeros((1, hidden_dim), jnp.float32)
    w2 = xavier_uniform(k2, hidden_dim, hidden_dim).astype(jnp.bfloat16)
    b2 = jnp.zeros((1, hidden_dim), jnp.float32)
    # Final 1-wide projection stays f32: it is applied on the VPU (elementwise
    # multiply + reduce), and v5e has no bf16 VPU. Stored as a (1, hidden) row.
    w3 = xavier_uniform(k3, hidden_dim, 1).reshape(1, hidden_dim)
    b3 = jnp.zeros((1, 1), jnp.float32)
    return (w1, b1, w2, b2, w3, b3)


def vnetwork_ref(state, params):
    """Pure-JAX reference mirroring the kernel's dtype policy."""
    w1, b1, w2, b2, w3, b3 = params
    x = state.astype(jnp.bfloat16)
    h1 = jnp.maximum(jnp.dot(x, w1, preferred_element_type=jnp.float32) + b1, 0.0)
    h2 = jnp.maximum(
        jnp.dot(h1.astype(jnp.bfloat16), w2, preferred_element_type=jnp.float32) + b2, 0.0)
    return jnp.sum(h2 * w3, axis=-1, keepdims=True) + b3


if __name__ == "__main__":
    B, num_inputs, hidden_dim = 8, 16, 32

    key = jax.random.PRNGKey(0)
    k_state, k_params = jax.random.split(key)

    state = jax.random.normal(k_state, (B, num_inputs), jnp.float32)
    params = init_vnetwork_params(k_params, num_inputs, hidden_dim)

    out = jax.block_until_ready(vnetwork_forward(state, params))
    ref = vnetwork_ref(state, params)

    assert out.shape == (B, 1)
    assert jnp.allclose(out, ref, atol=1e-4, rtol=1e-4), "mismatch vs reference"

    print("KERNEL_OK")
</pallas_src>

<mosaic_0001>
module attributes {stable_mosaic.version = 11 : i64} {
  func.func @vnetwork_kernel(%arg0: i32, %arg1: memref<8x16xf32, #tpu.memory_space<vmem>>, %arg2: memref<16x32xbf16, #tpu.memory_space<vmem>>, %arg3: memref<1x32xf32, #tpu.memory_space<vmem>>, %arg4: memref<32x32xbf16, #tpu.memory_space<vmem>>, %arg5: memref<1x32xf32, #tpu.memory_space<vmem>>, %arg6: memref<1x32xf32, #tpu.memory_space<vmem>>, %arg7: memref<1x1xf32, #tpu.memory_space<vmem>>, %arg8: memref<8x1xf32, #tpu.memory_space<vmem>>) attributes {dimension_semantics = [#tpu.dimension_semantics<parallel>], iteration_bounds = array<i64: 1>, scalar_prefetch = 0 : i64, scratch_operands = 0 : i64, tpu.core_type = #tpu.core_type<tc>, window_params = [{transform_indices = @transform_0, window_bounds = array<i64: 8, 16>}, {pipeline_mode = #tpu.pipeline_mode<synchronous>, transform_indices = @transform_1, window_bounds = array<i64: 16, 32>}, {pipeline_mode = #tpu.pipeline_mode<synchronous>, transform_indices = @transform_2, window_bounds = array<i64: 1, 32>}, {pipeline_mode = #tpu.pipeline_mode<synchronous>, transform_indices = @transform_3, window_bounds = array<i64: 32, 32>}, {pipeline_mode = #tpu.pipeline_mode<synchronous>, transform_indices = @transform_4, window_bounds = array<i64: 1, 32>}, {pipeline_mode = #tpu.pipeline_mode<synchronous>, transform_indices = @transform_5, window_bounds = array<i64: 1, 32>}, {pipeline_mode = #tpu.pipeline_mode<synchronous>, transform_indices = @transform_6, window_bounds = array<i64: 1, 1>}, {transform_indices = @transform_7, window_bounds = array<i64: 8, 1>}]} {
    %c0 = arith.constant 0 : index
    %c0_0 = arith.constant 0 : index
    %0 = vector.load %arg1[%c0, %c0_0] : memref<8x16xf32, #tpu.memory_space<vmem>>, vector<8x16xf32>
    %1 = arith.truncf %0 : vector<8x16xf32> to vector<8x16xbf16>
    %c0_1 = arith.constant 0 : index
    %c0_2 = arith.constant 0 : index
    %2 = vector.load %arg2[%c0_1, %c0_2] : memref<16x32xbf16, #tpu.memory_space<vmem>>, vector<16x32xbf16>
    %cst = arith.constant dense<0.000000e+00> : vector<8x32xf32>
    %3 = tpu.matmul %1, %2, %cst {dimension_numbers = #tpu.dot_dimension_numbers<[1], [0], [0], [1], [0, 0, 1, 1], [], []>} : vector<8x16xbf16>, vector<16x32xbf16>, vector<8x32xf32> -> vector<8x32xf32>
    %c0_3 = arith.constant 0 : index
    %c0_4 = arith.constant 0 : index
    %4 = vector.load %arg3[%c0_3, %c0_4] : memref<1x32xf32, #tpu.memory_space<vmem>>, vector<1x32xf32>
    %5 = vector.broadcast %4 : vector<1x32xf32> to vector<8x32xf32>
    %6 = arith.addf %3, %5 : vector<8x32xf32>
    %cst_5 = arith.constant 0.000000e+00 : f32
    %7 = vector.broadcast %cst_5 : f32 to vector<8x32xf32>
    %8 = arith.maximumf %6, %7 : vector<8x32xf32>
    %9 = arith.truncf %8 : vector<8x32xf32> to vector<8x32xbf16>
    %c0_6 = arith.constant 0 : index
    %c0_7 = arith.constant 0 : index
    %10 = vector.load %arg4[%c0_6, %c0_7] : memref<32x32xbf16, #tpu.memory_space<vmem>>, vector<32x32xbf16>
    %cst_8 = arith.constant dense<0.000000e+00> : vector<8x32xf32>
    %11 = tpu.matmul %9, %10, %cst_8 {dimension_numbers = #tpu.dot_dimension_numbers<[1], [0], [0], [1], [0, 0, 1, 1], [], []>} : vector<8x32xbf16>, vector<32x32xbf16>, vector<8x32xf32> -> vector<8x32xf32>
    %c0_9 = arith.constant 0 : index
    %c0_10 = arith.constant 0 : index
    %12 = vector.load %arg5[%c0_9, %c0_10] : memref<1x32xf32, #tpu.memory_space<vmem>>, vector<1x32xf32>
    %13 = vector.broadcast %12 : vector<1x32xf32> to vector<8x32xf32>
    %14 = arith.addf %11, %13 : vector<8x32xf32>
    %cst_11 = arith.constant 0.000000e+00 : f32
    %15 = vector.broadcast %cst_11 : f32 to vector<8x32xf32>
    %16 = arith.maximumf %14, %15 : vector<8x32xf32>
    %c0_12 = arith.constant 0 : index
    %c0_13 = arith.constant 0 : index
    %17 = vector.load %arg6[%c0_12, %c0_13] : memref<1x32xf32, #tpu.memory_space<vmem>>, vector<1x32xf32>
    %18 = vector.broadcast %17 : vector<1x32xf32> to vector<8x32xf32>
    %19 = arith.mulf %16, %18 : vector<8x32xf32>
    %cst_14 = arith.constant dense<0.000000e+00> : vector<8xf32>
    %20 = vector.multi_reduction <add>, %19, %cst_14 [1] : vector<8x32xf32> to vector<8xf32>
    %21 = vector.shape_cast %20 : vector<8xf32> to vector<8x1xf32>
    %c0_15 = arith.constant 0 : index
    %c0_16 = arith.constant 0 : index
    %22 = vector.load %arg7[%c0_15, %c0_16] : memref<1x1xf32, #tpu.memory_space<vmem>>, vector<1x1xf32>
    %23 = vector.broadcast %22 : vector<1x1xf32> to vector<8x1xf32>
    %24 = arith.addf %21, %23 : vector<8x1xf32>
    %c0_17 = arith.constant 0 : index
    %c0_18 = arith.constant 0 : index
    %25 = vector.load %arg8[%c0_17, %c0_18] : memref<8x1xf32, #tpu.memory_space<vmem>>, vector<8x1xf32>
    tpu.vector_store %arg8[%c0_17, %c0_18], %24 {strides = array<i32>} : memref<8x1xf32, #tpu.memory_space<vmem>>, vector<8x1xf32>,
    return
  }
  func.func @transform_0(%arg0: i32) -> (i32, i32) {
    %c0_i32 = arith.constant 0 : i32
    %c0_i32_0 = arith.constant 0 : i32
    return %arg0, %c0_i32 : i32, i32
  }
  func.func @transform_1(%arg0: i32) -> (i32, i32) {
    %c0_i32 = arith.constant 0 : i32
    %c0_i32_0 = arith.constant 0 : i32
    %c0_i32_1 = arith.constant 0 : i32
    return %c0_i32, %c0_i32_0 : i32, i32
  }
  func.func @transform_2(%arg0: i32) -> (i32, i32) {
    %c0_i32 = arith.constant 0 : i32
    %c0_i32_0 = arith.constant 0 : i32
    %c0_i32_1 = arith.constant 0 : i32
    return %c0_i32, %c0_i32_0 : i32, i32
  }
  func.func @transform_3(%arg0: i32) -> (i32, i32) {
    %c0_i32 = arith.constant 0 : i32
    %c0_i32_0 = arith.constant 0 : i32
    %c0_i32_1 = arith.constant 0 : i32
    return %c0_i32, %c0_i32_0 : i32, i32
  }
  func.func @transform_4(%arg0: i32) -> (i32, i32) {
    %c0_i32 = arith.constant 0 : i32
    %c0_i32_0 = arith.constant 0 : i32
    %c0_i32_1 = arith.constant 0 : i32
    return %c0_i32, %c0_i32_0 : i32, i32
  }
  func.func @transform_5(%arg0: i32) -> (i32, i32) {
    %c0_i32 = arith.constant 0 : i32
    %c0_i32_0 = arith.constant 0 : i32
    %c0_i32_1 = arith.constant 0 : i32
    return %c0_i32, %c0_i32_0 : i32, i32
  }
  func.func @transform_6(%arg0: i32) -> (i32, i32) {
    %c0_i32 = arith.constant 0 : i32
    %c0_i32_0 = arith.constant 0 : i32
    %c0_i32_1 = arith.constant 0 : i32
    return %c0_i32, %c0_i32_0 : i32, i32
  }
  func.func @transform_7(%arg0: i32) -> (i32, i32) {
    %c0_i32 = arith.constant 0 : i32
    %c0_i32_0 = arith.constant 0 : i32
    return %arg0, %c0_i32 : i32, i32
  }
}

</mosaic_0001>

<llo_original>
// kernel: vnetwork_forward.1
$region0: #{vnetwork_forward.1}
  #allocation0 [shape = 'u32[]', space=smem, size = 0x4, offset = 0x4, fixed_abs, tag = 'smem constant byte address 0x4 - core index']
  #allocation1 [shape = 'u32[144,128]{1,0:T(1,128)}', space=vmem, size = 0x12000, scoped, tag = 'internal scratch']
  #allocation2 [shape = 'f32[1,1]{1,0:T(1,128)S(1)}', space=vmem, size = 0x200, scoped, tag = 'scoped memory for vnetwork_forward.1']
  %s0 = inlined_call_operand.hbm [shape: f32[8,16], index: 0, kind: input, shape index: {}]
  %s1 = inlined_call_operand.hbm [shape: bf16[16,32], index: 1, kind: input, shape index: {}]
  %s2 = inlined_call_operand.vmem [shape: f32[1,32], index: 2, kind: input, shape index: {}]
  %s3 = inlined_call_operand.hbm [shape: bf16[32,32], index: 3, kind: input, shape index: {}]
  %s4 = inlined_call_operand.vmem [shape: f32[1,32], index: 4, kind: input, shape index: {}]
  %s5 = inlined_call_operand.vmem [shape: f32[1,32], index: 5, kind: input, shape index: {}]
  %s6 = inlined_call_operand.<no memory space> [shape: f32[1,1], index: 6, kind: input, shape index: {}]
  %s7 = inlined_call_operand.vmem [shape: f32[8,1], index: 7, kind: output, shape index: {}]
  %s8 = sld [smem:[#allocation0]]
  $region50: #{vnetwork_forward.1} parent=0
    _
  %s10 = ssub.s32 1, %s8
  %s11 = scalar_select 0, %s10, %s8
  %v12 = vstv %s6
  %13 = vst [vmem:[#allocation2] sm:$0x1] %v12
  $region1: #{vnetwork_forward.1} parent=0
    #allocation3 [shape = 'u8[4096]{0}', space=vmem, size = 0x1000, scoped, tag = 'input window, operand 0, single buffered']
    #allocation4 [shape = 's32[1]{0}', space=sflag, size = 0x4, scoped, tag = 'scoped memory for vnetwork_forward.1']
    #allocation5 [shape = 'u8[4096]{0}', space=vmem, size = 0x1000, scoped, tag = 'input window, operand 1, single buffered']
    #allocation6 [shape = 's32[1]{0}', space=sflag, size = 0x4, scoped, tag = 'scoped memory for vnetwork_forward.1']
    #allocation7 [shape = 'u8[8192]{0}', space=vmem, size = 0x2000, scoped, tag = 'input window, operand 3, single buffered']
    %14 = vsyncpa [#allocation4], 0
    %15 = vsyncpa [#allocation6], 0
    // Predicated region
    $region2: #{vnetwork_forward.1} parent=1 // pred_check
      _
    $region3: #{vnetwork_forward.1} parent=1 // pred_check_branch
      %17 = sbr.rel (0) target = $region5
    $region4: #{vnetwork_forward.1} parent=1 // pred_region
      %s19 = ssub.s32 128, 128
      %20 = vsyncadd [#allocation4], %s19
      %s22 = sshll.u32 [#allocation3], 4
      %s23 = int_to_ptr.vmem [resolvable:$true] %s22
      %25 = dma.hbm_to_vmem [thread:$0]  %s0, 128, %s23, [#allocation4]
    $region5: #{vnetwork_forward.1} parent=1 // pred_fallthru
      _
    // Predicated region
    $region6: #{vnetwork_forward.1} parent=1 // pred_check
      _
    $region7: #{vnetwork_forward.1} parent=1 // pred_check_branch
      %27 = sbr.rel (0) target = $region9
    $region8: #{vnetwork_forward.1} parent=1 // pred_region
      %s29 = ssub.s32 128, 128
      %30 = vsyncadd [#allocation6], %s29
      %s31 = sshll.u32 [#allocation5], 4
      %s32 = int_to_ptr.vmem [resolvable:$true] %s31
      %37 = dma.hbm_to_vmem [thread:$0]  %s1, 128, %s32, [#allocation6], 64, 64, 4
    $region9: #{vnetwork_forward.1} parent=1 // pred_fallthru
      _
    // Predicated region
    $region10: #{vnetwork_forward.1} parent=1 // pred_check
      _
    $region11: #{vnetwork_forward.1} parent=1 // pred_check_branch
      %39 = sbr.rel (0) target = $region13
    $region12: #{vnetwork_forward.1} parent=1 // pred_region
      _
    $region13: #{vnetwork_forward.1} parent=1 // pred_fallthru
      _
    // Predicated region
    $region14: #{vnetwork_forward.1} parent=1 // pred_check
      _
    $region15: #{vnetwork_forward.1} parent=1 // pred_check_branch
      %41 = sbr.rel (0) target = $region17
    $region16: #{vnetwork_forward.1} parent=1 // pred_region
      %s43 = ssub.s32 256, 256
      %44 = vsyncadd [#allocation6], %s43
      %s45 = sshll.u32 [#allocation7], 4
      %s46 = int_to_ptr.vmem [resolvable:$true] %s45
      %51 = dma.hbm_to_vmem [thread:$0]  %s3, 256, %s46, [#allocation6], 64, 64, 4
    $region17: #{vnetwork_forward.1} parent=1 // pred_fallthru
      _
    // Predicated region
    $region18: #{vnetwork_forward.1} parent=1 // pred_check
      _
    $region19: #{vnetwork_forward.1} parent=1 // pred_check_branch
      %53 = sbr.rel (0) target = $region21
    $region20: #{vnetwork_forward.1} parent=1 // pred_region
      _
    $region21: #{vnetwork_forward.1} parent=1 // pred_fallthru
      _
    // Predicated region
    $region22: #{vnetwork_forward.1} parent=1 // pred_check
      _
    $region23: #{vnetwork_forward.1} parent=1 // pred_check_branch
      %55 = sbr.rel (0) target = $region25
    $region24: #{vnetwork_forward.1} parent=1 // pred_region
      _
    $region25: #{vnetwork_forward.1} parent=1 // pred_fallthru
      _
    // Predicated region
    $region26: #{vnetwork_forward.1} parent=1 // pred_check
      _
    $region27: #{vnetwork_forward.1} parent=1 // pred_check_branch
      %57 = sbr.rel (0) target = $region29
    $region28: #{vnetwork_forward.1} parent=1 // pred_region
      _
    $region29: #{vnetwork_forward.1} parent=1 // pred_fallthru
      _
    // Predicated region
    $region30: #{vnetwork_forward.1} parent=1 // pred_check
      _
    $region31: #{vnetwork_forward.1} parent=1 // pred_check_branch
      %59 = sbr.rel (0) target = $region33
    $region32: #{vnetwork_forward.1} parent=1 // pred_region
      %60 = dma.done [#allocation4], 128
    $region33: #{vnetwork_forward.1} parent=1 // pred_fallthru
      _
    // Predicated region
    $region34: #{vnetwork_forward.1} parent=1 // pred_check
      _
    $region35: #{vnetwork_forward.1} parent=1 // pred_check_branch
      %62 = sbr.rel (0) target = $region37
    $region36: #{vnetwork_forward.1} parent=1 // pred_region
      %63 = dma.done [#allocation6], 128
    $region37: #{vnetwork_forward.1} parent=1 // pred_fallthru
      _
    // Predicated region
    $region38: #{vnetwork_forward.1} parent=1 // pred_check
      _
    $region39: #{vnetwork_forward.1} parent=1 // pred_check_branch
      %65 = sbr.rel (0) target = $region41
    $region40: #{vnetwork_forward.1} parent=1 // pred_region
      %66 = dma.done [#allocation6], 256
    $region41: #{vnetwork_forward.1} parent=1 // pred_fallthru
      _
    %v68 = vld [vmem:[#allocation3] sm:$0xff]
    %v69 = vpack.c.bf16 %v68, %v68
    %v70 = vld [vmem:[#allocation5] sm:$0xf]
    %v71 = vld [vmem:[#allocation5 + $0x4] sm:$0xf]
    %v72 = vld [vmem:[%s2] sm:$0x1]
    %v74 = vlaneseq
    %v75 = vshrl.u32 %v74, 7
    %v76 = vsub.s32 0, %v75
    %v77 = vrot.slane %v72, %v76
    %v81 = vunpack.c.l.b16 %v70
    %v82 = vunpack.c.l.b16 %v71
    %v83 = vpack.c.b16 %v82, %v81
    %vm85 = vcmask 130048
    %v87 = vsel %vm85, %v69, 0
    %89 = vmatprep.subr.bf16.mxu0 0
    %90 = vmatpush1.bf16.msra.mxu0 %v83
    %91 = vmatprep.subr.bf16.mxu0 0
    %92 = vmatpush1.bf16.msra.mxu0 0
    %93 = vmatprep.subr.bf16.mxu0 0
    %94 = vmatpush1.bf16.msra.mxu0 0
    %95 = vmatprep.subr.bf16.mxu0 0
    %96 = vmatpush1.bf16.msra.mxu0 0
    %97 = vmatprep.subr.bf16.mxu0 0
    %98 = vmatpush1.bf16.msra.mxu0 0
    %99 = vmatprep.subr.bf16.mxu0 0
    %100 = vmatpush1.bf16.msra.mxu0 0
    %101 = vmatprep.subr.bf16.mxu0 0
    %102 = vmatpush1.bf16.msra.mxu0 0
    %103 = vmatprep.subr.bf16.mxu0 0
    %104 = vmatpush1.bf16.msra.mxu0 0
    %105 = vmatprep.subr.bf16.mxu0 0
    %106 = vmatpush1.bf16.msra.mxu0 0
    %107 = vmatprep.subr.bf16.mxu0 0
    %108 = vmatpush1.bf16.msra.mxu0 0
    %109 = vmatprep.subr.bf16.mxu0 0
    %110 = vmatpush1.bf16.msra.mxu0 0
    %111 = vmatprep.subr.bf16.mxu0 0
    %112 = vmatpush1.bf16.msra.mxu0 0
    %113 = vmatprep.subr.bf16.mxu0 0
    %114 = vmatpush1.bf16.msra.mxu0 0
    %115 = vmatprep.subr.bf16.mxu0 0
    %116 = vmatpush1.bf16.msra.mxu0 0
    %117 = vmatprep.subr.bf16.mxu0 0
    %118 = vmatpush1.bf16.msra.mxu0 0
    %119 = vmatprep.subr.bf16.mxu0 0
    %120 = vmatpush1.bf16.msra.mxu0 0
    %121 = vmatprep.mubr.bf16.mxu0 0
    %122 = vmatmul.mubr.bf16.gmra.mrb[0].mxu0 %v87
    %v123 = vpop.f32.mrb[0].mxu0
    %v124 = vadd.f32 %v77, %v123
    %v125 = vpop.f32.mrb[0].mxu0
    %v126 = vpop.f32.mrb[0].mxu0
    %v127 = vpop.f32.mrb[0].mxu0
    %128 = vdwg.mxu0
    %v129 = vmax.f32 %v124, 0.0
    %v130 = vpack.c.bf16 %v129, %v129
    %v131 = vld [vmem:[#allocation7] sm:$0xf]
    %v132 = vld [vmem:[#allocation7 + $0x4] sm:$0xf]
    %v133 = vld [vmem:[#allocation7 + $0x8] sm:$0xf]
    %v134 = vld [vmem:[#allocation7 + $0xc] sm:$0xf]
    %v135 = vld [vmem:[%s4] sm:$0x1]
    %v137 = vlaneseq
    %v138 = vshrl.u32 %v137, 7
    %v139 = vsub.s32 0, %v138
    %v140 = vrot.slane %v135, %v139
    %v146 = vunpack.c.l.b16 %v131
    %v147 = vunpack.c.l.b16 %v132
    %v148 = vunpack.c.l.b16 %v133
    %v149 = vunpack.c.l.b16 %v134
    %v150 = vpack.c.b16 %v147, %v146
    %v151 = vpack.c.b16 %v149, %v148
    %vm154 = vcmask 261120
    %v156 = vsel %vm154, %v130, 0
    %158 = vmatprep.subr.bf16.mxu0 0
    %159 = vmatpush1.bf16.msra.mxu0 %v150
    %160 = vmatprep.subr.bf16.mxu0 0
    %161 = vmatpush1.bf16.msra.mxu0 %v151
    %162 = vmatprep.subr.bf16.mxu0 0
    %163 = vmatpush1.bf16.msra.mxu0 0
    %164 = vmatprep.subr.bf16.mxu0 0
    %165 = vmatpush1.bf16.msra.mxu0 0
    %166 = vmatprep.subr.bf16.mxu0 0
    %167 = vmatpush1.bf16.msra.mxu0 0
    %168 = vmatprep.subr.bf16.mxu0 0
    %169 = vmatpush1.bf16.msra.mxu0 0
    %170 = vmatprep.subr.bf16.mxu0 0
    %171 = vmatpush1.bf16.msra.mxu0 0
    %172 = vmatprep.subr.bf16.mxu0 0
    %173 = vmatpush1.bf16.msra.mxu0 0
    %174 = vmatprep.subr.bf16.mxu0 0
    %175 = vmatpush1.bf16.msra.mxu0 0
    %176 = vmatprep.subr.bf16.mxu0 0
    %177 = vmatpush1.bf16.msra.mxu0 0
    %178 = vmatprep.subr.bf16.mxu0 0
    %179 = vmatpush1.bf16.msra.mxu0 0
    %180 = vmatprep.subr.bf16.mxu0 0
    %181 = vmatpush1.bf16.msra.mxu0 0
    %182 = vmatprep.subr.bf16.mxu0 0
    %183 = vmatpush1.bf16.msra.mxu0 0
    %184 = vmatprep.subr.bf16.mxu0 0
    %185 = vmatpush1.bf16.msra.mxu0 0
    %186 = vmatprep.subr.bf16.mxu0 0
    %187 = vmatpush1.bf16.msra.mxu0 0
    %188 = vmatprep.subr.bf16.mxu0 0
    %189 = vmatpush1.bf16.msra.mxu0 0
    %190 = vmatprep.mubr.bf16.mxu0 0
    %191 = vmatmul.mubr.bf16.gmra.mrb[0].mxu0 %v156
    %v192 = vpop.f32.mrb[0].mxu0
    %v193 = vadd.f32 %v140, %v192
    %v194 = vpop.f32.mrb[0].mxu0
    %v195 = vpop.f32.mrb[0].mxu0
    %v196 = vpop.f32.mrb[0].mxu0
    %197 = vdwg.mxu0
    %v198 = vmax.f32 %v193, 0.0
    %v199 = vld [vmem:[%s5] sm:$0x1]
    %v201 = vlaneseq
    %v202 = vshrl.u32 %v201, 7
    %v203 = vsub.s32 0, %v202
    %v204 = vrot.slane %v199, %v203
    %v206 = vmul.f32 %v198, %v204
    %v207 = vsel %vm154, %v206, 0.0
    %208 = vadd.xlane.f32.xlu0 %v207
    %v209 = vpop.xlane.xlu0 %208
    %v210 = vld [vmem:[#allocation2] sm:$0x1]
    %v212 = vlaneseq
    %v213 = vshrl.u32 %v212, 7
    %v214 = vsub.s32 0, %v213
    %v215 = vrot.slane %v210, %v214
    %v217 = vadd.f32 %v209, %v215
    %vm218 = vcmask 7168
    %219 = vst.msk [vmem:[%s7] sm:$0xff] %vm218, %v217
    // Predicated region
    $region42: #{vnetwork_forward.1} parent=1 // pred_check
      _
    $region43: #{vnetwork_forward.1} parent=1 // pred_check_branch
      %221 = sbr.rel (0) target = $region45
    $region44: #{vnetwork_forward.1} parent=1 // pred_region
      _
    $region45: #{vnetwork_forward.1} parent=1 // pred_fallthru
      _
    // Predicated region
    $region46: #{vnetwork_forward.1} parent=1 // pred_check
      _
    $region47: #{vnetwork_forward.1} parent=1 // pred_check_branch
      %223 = sbr.rel (0) target = $region49
    $region48: #{vnetwork_forward.1} parent=1 // pred_region
      _
    $region49: #{vnetwork_forward.1} parent=1 // pred_fallthru
      _
    %224 = vsyncpa [#allocation4], 1
    %225 = vsyncpa [#allocation6], 1

</llo_original>
